<compile_context>
chip_gen: v6e
topology: v6e:2x2x1
jax: 0.10.0
libtpu: 0.0.40
codegen_flags: <defaults>
</compile_context>

<pallas_src>
import functools

import jax
import jax.numpy as jnp
from jax import lax
from jax.experimental import pallas as pl
from jax.experimental.pallas import tpu as pltpu


# Tile budget (bf16 operands, double buffered):
#   x: 2*512*2048*2 B = 4 MiB,  w: 2*512*2048*2 B = 4 MiB,
#   out(f32): 2*512*512*4 B = 2 MiB  ->  ~10 MiB total.
_TM_MAX = 512
_TN_MAX = 512
_TK_MAX = 2048
_VMEM_LIMIT_BYTES = 48 * 1024 * 1024   # >> footprint, < v7x 64 MiB physical


def _round_up(x, m):
    return ((x + m - 1) // m) * m


def _sublane_multiple(dtype):
    # Minimal second-to-last-dim granularity: f32 -> 8, bf16 -> 16, int8 -> 32.
    return max(8, 32 // jnp.dtype(dtype).itemsize)


def _pick_tile(dim, unit, max_tile):
    """Largest multiple of `unit` that divides `dim` and is <= max_tile."""
    if dim <= max_tile:
        return dim
    t = max_tile - (max_tile % unit)
    while t >= unit:
        if dim % t == 0:
            return t
        t -= unit
    return unit


def _linear_kernel_f32_out(x_ref, w_ref, o_ref):
    """x:(tm,tk), w:(tn,tk), o:(tm,tn) f32.

    Accumulates directly into the VMEM-resident output block across the
    innermost K grid axis (no scratch, no final copy)."""
    @pl.when(pl.program_id(2) == 0)
    def _():
        o_ref[...] = jnp.zeros_like(o_ref)

    # NT contraction: K is the lane axis of both operands; the weight transpose
    # is folded into the MXU contraction, never materialized.
    o_ref[...] += lax.dot_general(
        x_ref[...], w_ref[...],
        dimension_numbers=(((1,), (1,)), ((), ())),
        preferred_element_type=jnp.float32,
    )


def _linear_kernel_acc_scratch(x_ref, w_ref, o_ref, acc_ref):
    """Same contraction, but accumulates in a f32 scratch and casts once on the
    last K step (used when the requested output dtype is not f32)."""
    k = pl.program_id(2)

    @pl.when(k == 0)
    def _():
        acc_ref[...] = jnp.zeros_like(acc_ref)

    acc_ref[...] += lax.dot_general(
        x_ref[...], w_ref[...],
        dimension_numbers=(((1,), (1,)), ((), ())),
        preferred_element_type=jnp.float32,
    )

    @pl.when(k == pl.num_programs(2) - 1)
    def _():
        o_ref[...] = acc_ref[...].astype(o_ref.dtype)


@functools.partial(jax.jit, static_argnames=("compute_dtype", "out_dtype"))
def classifier_head(x, weight, *, compute_dtype=jnp.bfloat16, out_dtype=None):
    """Equivalent of nn.Linear(feature_dim, num_classes, bias=False)(x).

    x:      (batch, feature_dim)
    weight: (num_classes, feature_dim)  -- PyTorch Linear layout (never transposed)
    """
    batch, feature_dim = x.shape
    num_classes, feature_dim_w = weight.shape
    assert feature_dim == feature_dim_w

    if out_dtype is None:
        out_dtype = x.dtype
    compute_dtype = jnp.dtype(compute_dtype)
    out_dtype = jnp.dtype(out_dtype)

    # Operands are contracted in compute_dtype (bf16 default) with f32
    # accumulation.  If the caller already stores x/weight in bf16 these casts
    # are no-ops; for f32-stored GiB-scale weights, cast once outside the
    # per-step path to avoid a per-call HBM copy.
    xc = x.astype(compute_dtype)
    wc = weight.astype(compute_dtype)

    m_gran = _sublane_multiple(compute_dtype)

    # K (lane axis of both operands): no pad if feature_dim is a 128 multiple.
    k_pad = _round_up(feature_dim, 128)
    tk = _pick_tile(k_pad, 128, _TK_MAX)

    # N (weight rows / output lanes): no weight pad for 128-multiple classes.
    n_pad = _round_up(num_classes, 128)
    tn = _pick_tile(n_pad, 128, _TN_MAX)

    # M (batch): padding x / output is cheap; keep tiles big for large batches
    # (avoid drain-dominated skinny MXU pushes), dtype-aware granularity.
    m_base = _round_up(batch, m_gran)
    if m_base <= _TM_MAX:
        tm = m_base
    else:
        tm = _pick_tile(m_base, m_gran, _TM_MAX)
        if tm < 256:
            tm = _TM_MAX
    m_pad = _round_up(batch, tm)

    # Zero-pad only where strictly required (zeros are benign for the dot).
    if (m_pad, k_pad) != (batch, feature_dim):
        xc = jnp.pad(xc, ((0, m_pad - batch), (0, k_pad - feature_dim)))
    if (n_pad, k_pad) != (num_classes, feature_dim):
        # Only hit when num_classes/feature_dim are not 128 multiples.
        # TODO(synk): for ragged K on GiB-scale weights, mask the K edge
        # in-kernel instead of materializing a padded weight copy.
        wc = jnp.pad(wc, ((0, n_pad - num_classes), (0, k_pad - feature_dim)))

    grid = (m_pad // tm, n_pad // tn, k_pad // tk)

    f32_out = out_dtype == jnp.dtype(jnp.float32)
    kernel = _linear_kernel_f32_out if f32_out else _linear_kernel_acc_scratch
    scratch = [] if f32_out else [pltpu.VMEM((tm, tn), jnp.float32)]

    out_padded = pl.pallas_call(
        kernel,
        out_shape=jax.ShapeDtypeStruct((m_pad, n_pad), out_dtype),
        grid_spec=pltpu.PrefetchScalarGridSpec(
            num_scalar_prefetch=0,
            grid=grid,
            in_specs=[
                # Activations: (tm, tk) over (M, K).  With m_pad <= _TM_MAX this
                # is a single M-resident block per K step, so the weight streams
                # from HBM exactly once for the whole call.
                pl.BlockSpec((tm, tk), lambda i, j, k: (i, k)),
                # Weight in PyTorch layout: (tn, tk) tiles over (N, K);
                # contraction is on the lane axis (NT matmul), no transpose.
                pl.BlockSpec((tn, tk), lambda i, j, k: (j, k)),
            ],
            out_specs=pl.BlockSpec((tm, tn), lambda i, j, k: (i, j)),
            scratch_shapes=scratch,
        ),
        compiler_params=pltpu.CompilerParams(
            # N (and M when >1 block) carry megacore parallelism on v7x;
            # K is the innermost reduction axis (accumulator correctness).
            dimension_semantics=("parallel", "parallel", "arbitrary"),
            vmem_limit_bytes=_VMEM_LIMIT_BYTES,
        ),
    )(xc, wc)

    if (m_pad, n_pad) != (batch, num_classes):
        out_padded = out_padded[:batch, :num_classes]
    return out_padded


if __name__ == "__main__":
    key = jax.random.PRNGKey(0)
    kx, kw = jax.random.split(key)

    batch, feature_dim, num_classes = 8, 32, 16

    x = jax.random.normal(kx, (batch, feature_dim), dtype=jnp.float32)
    # Deterministic init mimicking nn.Linear's kaiming-uniform range.
    bound = 1.0 / (feature_dim ** 0.5)
    weight = jax.random.uniform(
        kw, (num_classes, feature_dim), dtype=jnp.float32,
        minval=-bound, maxval=bound,
    )

    # Default (recommended) path: bf16 operands, f32 accumulation, f32 output.
    out = classifier_head(x, weight)
    jax.block_until_ready(out)
    assert out.shape == (batch, num_classes)
    assert out.dtype == x.dtype

    # Reference in the same precision regime (bf16 operands, f32 accumulation).
    ref_bf16 = jnp.dot(
        x.astype(jnp.bfloat16), weight.astype(jnp.bfloat16).T,
        preferred_element_type=jnp.float32,
    )
    assert jnp.allclose(out, ref_bf16, atol=1e-4, rtol=1e-4)

    # Exact-f32 path check against the plain-JAX reference (same as nn.Linear).
    out_f32 = classifier_head(x, weight, compute_dtype=jnp.float32)
    jax.block_until_ready(out_f32)
    ref_f32 = x @ weight.T
    assert jnp.allclose(out_f32, ref_f32, atol=1e-5, rtol=1e-5)

    print("KERNEL_OK")
</pallas_src>

<mosaic_0001>
module attributes {stable_mosaic.version = 11 : i64} {
  func.func @_linear_kernel_f32_out(%arg0: i32, %arg1: i32, %arg2: i32, %arg3: memref<16x128xbf16, #tpu.memory_space<vmem>>, %arg4: memref<128x128xbf16, #tpu.memory_space<vmem>>, %arg5: memref<16x128xf32, #tpu.memory_space<vmem>>) attributes {dimension_semantics = [#tpu.dimension_semantics<parallel>, #tpu.dimension_semantics<parallel>, #tpu.dimension_semantics<arbitrary>], iteration_bounds = array<i64: 1, 1, 1>, scalar_prefetch = 0 : i64, scratch_operands = 0 : i64, tpu.core_type = #tpu.core_type<tc>, window_params = [{transform_indices = @transform_0, window_bounds = array<i64: 16, 128>}, {transform_indices = @transform_1, window_bounds = array<i64: 128, 128>}, {transform_indices = @transform_2, window_bounds = array<i64: 16, 128>}]} {
    %c0_i32 = arith.constant 0 : i32
    %0 = arith.cmpi eq, %arg2, %c0_i32 : i32
    %1 = arith.extui %0 : i1 to i32
    %c0_i32_0 = arith.constant 0 : i32
    %2 = arith.cmpi ne, %1, %c0_i32_0 : i32
    scf.if %2 {
      %cst_8 = arith.constant 0.000000e+00 : f32
      %9 = vector.broadcast %cst_8 : f32 to vector<16x128xf32>
      %c0_9 = arith.constant 0 : index
      %c0_10 = arith.constant 0 : index
      %10 = vector.load %arg5[%c0_9, %c0_10] : memref<16x128xf32, #tpu.memory_space<vmem>>, vector<16x128xf32>
      tpu.vector_store %arg5[%c0_9, %c0_10], %9 {strides = array<i32>} : memref<16x128xf32, #tpu.memory_space<vmem>>, vector<16x128xf32>,
    } else {
    }
    %c0 = arith.constant 0 : index
    %c0_1 = arith.constant 0 : index
    %3 = vector.load %arg5[%c0, %c0_1] : memref<16x128xf32, #tpu.memory_space<vmem>>, vector<16x128xf32>
    %c0_2 = arith.constant 0 : index
    %c0_3 = arith.constant 0 : index
    %4 = vector.load %arg3[%c0_2, %c0_3] : memref<16x128xbf16, #tpu.memory_space<vmem>>, vector<16x128xbf16>
    %c0_4 = arith.constant 0 : index
    %c0_5 = arith.constant 0 : index
    %5 = vector.load %arg4[%c0_4, %c0_5] : memref<128x128xbf16, #tpu.memory_space<vmem>>, vector<128x128xbf16>
    %cst = arith.constant dense<0.000000e+00> : vector<16x128xf32>
    %6 = tpu.matmul %4, %5, %cst {dimension_numbers = #tpu.dot_dimension_numbers<[1], [1], [0], [0], [0, 0, 1, 0], [], []>} : vector<16x128xbf16>, vector<128x128xbf16>, vector<16x128xf32> -> vector<16x128xf32>
    %7 = arith.addf %3, %6 : vector<16x128xf32>
    %c0_6 = arith.constant 0 : index
    %c0_7 = arith.constant 0 : index
    %8 = vector.load %arg5[%c0_6, %c0_7] : memref<16x128xf32, #tpu.memory_space<vmem>>, vector<16x128xf32>
    tpu.vector_store %arg5[%c0_6, %c0_7], %7 {strides = array<i32>} : memref<16x128xf32, #tpu.memory_space<vmem>>, vector<16x128xf32>,
    return
  }
  func.func @transform_0(%arg0: i32, %arg1: i32, %arg2: i32) -> (i32, i32) {
    %c0_i32 = arith.constant 0 : i32
    return %arg0, %arg2 : i32, i32
  }
  func.func @transform_1(%arg0: i32, %arg1: i32, %arg2: i32) -> (i32, i32) {
    %c0_i32 = arith.constant 0 : i32
    return %arg1, %arg2 : i32, i32
  }
  func.func @transform_2(%arg0: i32, %arg1: i32, %arg2: i32) -> (i32, i32) {
    %c0_i32 = arith.constant 0 : i32
    return %arg0, %arg1 : i32, i32
  }
}

</mosaic_0001>

<llo_original>
// kernel: classifier_head.1
$region0: #{classifier_head.1}
  #allocation0 [shape = 'u32[]', space=smem, size = 0x4, offset = 0x4, fixed_abs, tag = 'smem constant byte address 0x4 - core index']
  #allocation1 [shape = 'u32[144,128]{1,0:T(1,128)}', space=vmem, size = 0x12000, scoped, tag = 'internal scratch']
  %s0 = inlined_call_operand.vmem [shape: bf16[16,128], index: 0, kind: input, shape index: {}]
  %s1 = inlined_call_operand.vmem [shape: bf16[128,128], index: 1, kind: input, shape index: {}]
  %s2 = inlined_call_operand.vmem [shape: f32[16,128], index: 2, kind: output, shape index: {}]
  %s3 = sld [smem:[#allocation0]]
  $region22: #{classifier_head.1} parent=0
    _
  %s5 = ssub.s32 1, %s3
  %s6 = scalar_select 0, %s5, %s3
  // Predicated region
  $region2: #{classifier_head.1} parent=0 // pred_check
    _
  $region3: #{classifier_head.1} parent=0 // pred_check_branch
    %8 = sbr.rel (0) target = $region5
  $region4: #{classifier_head.1} parent=0 // pred_region
    _
  $region5: #{classifier_head.1} parent=0 // pred_fallthru
    _
  // Predicated region
  $region6: #{classifier_head.1} parent=0 // pred_check
    _
  $region7: #{classifier_head.1} parent=0 // pred_check_branch
    %10 = sbr.rel (0) target = $region9
  $region8: #{classifier_head.1} parent=0 // pred_region
    _
  $region9: #{classifier_head.1} parent=0 // pred_fallthru
    _
  %p12 = scmp.eq.s32.totalorder 0, 0
  // Predicated region
  $region10: #{classifier_head.1} parent=0 // pred_check
    %p13 = pneg %p12
  $region11: #{classifier_head.1} parent=0 // pred_check_branch
    %15 = sbr.rel (%p13) target = $region13
  $region12: #{classifier_head.1} parent=0 // pred_region
    %16 = vst [vmem:[%s2] sm:$0xff] 0.0
    %17 = vst [vmem:[%s2 + $0x8] sm:$0xff] 0.0
  $region13: #{classifier_head.1} parent=0 // pred_fallthru
    _
  %v18 = vld [vmem:[%s2] sm:$0xff]
  %v19 = vld [vmem:[%s2 + $0x8] sm:$0xff]
  %v20 = vld [vmem:[%s0] sm:$0xf]
  %v21 = vld [vmem:[%s0 + $0x4] sm:$0xf]
  %v22 = vld [vmem:[%s1] sm:$0xf]
  %v23 = vld [vmem:[%s1 + $0x4] sm:$0xf]
  %v24 = vld [vmem:[%s1 + $0x8] sm:$0xf]
  %v25 = vld [vmem:[%s1 + $0xc] sm:$0xf]
  %v26 = vld [vmem:[%s1 + $0x10] sm:$0xf]
  %v27 = vld [vmem:[%s1 + $0x14] sm:$0xf]
  %v28 = vld [vmem:[%s1 + $0x18] sm:$0xf]
  %v29 = vld [vmem:[%s1 + $0x1c] sm:$0xf]
  %v30 = vld [vmem:[%s1 + $0x20] sm:$0xf]
  %v31 = vld [vmem:[%s1 + $0x24] sm:$0xf]
  %v32 = vld [vmem:[%s1 + $0x28] sm:$0xf]
  %v33 = vld [vmem:[%s1 + $0x2c] sm:$0xf]
  %v34 = vld [vmem:[%s1 + $0x30] sm:$0xf]
  %v35 = vld [vmem:[%s1 + $0x34] sm:$0xf]
  %v36 = vld [vmem:[%s1 + $0x38] sm:$0xf]
  %v37 = vld [vmem:[%s1 + $0x3c] sm:$0xf]
  %v40 = vunpack.c.l.b16 %v20
  %v41 = vunpack.c.l.b16 %v21
  %v42 = vpack.c.b16 %v41, %v40
  %v60 = vunpack.c.l.b16 %v22
  %v61 = vunpack.c.l.b16 %v23
  %v62 = vunpack.c.l.b16 %v24
  %v63 = vunpack.c.l.b16 %v25
  %v64 = vunpack.c.l.b16 %v26
  %v65 = vunpack.c.l.b16 %v27
  %v66 = vunpack.c.l.b16 %v28
  %v67 = vunpack.c.l.b16 %v29
  %v68 = vunpack.c.l.b16 %v30
  %v69 = vunpack.c.l.b16 %v31
  %v70 = vunpack.c.l.b16 %v32
  %v71 = vunpack.c.l.b16 %v33
  %v72 = vunpack.c.l.b16 %v34
  %v73 = vunpack.c.l.b16 %v35
  %v74 = vunpack.c.l.b16 %v36
  %v75 = vunpack.c.l.b16 %v37
  %v76 = vpack.c.b16 %v61, %v60
  %v77 = vpack.c.b16 %v63, %v62
  %v78 = vpack.c.b16 %v65, %v64
  %v79 = vpack.c.b16 %v67, %v66
  %v80 = vpack.c.b16 %v69, %v68
  %v81 = vpack.c.b16 %v71, %v70
  %v82 = vpack.c.b16 %v73, %v72
  %v83 = vpack.c.b16 %v75, %v74
  %92 = vmatprep.subr.bf16.mxu0 0
  %93 = vmatpush1.bf16.xpose.msra.mxu0 %v83
  %94 = vmatprep.subr.bf16.mxu0 0
  %95 = vmatpush1.bf16.xpose.msra.mxu0 %v82
  %96 = vmatprep.subr.bf16.mxu0 0
  %97 = vmatpush1.bf16.xpose.msra.mxu0 %v81
  %98 = vmatprep.subr.bf16.mxu0 0
  %99 = vmatpush1.bf16.xpose.msra.mxu0 %v80
  %100 = vmatprep.subr.bf16.mxu0 0
  %101 = vmatpush1.bf16.xpose.msra.mxu0 %v79
  %102 = vmatprep.subr.bf16.mxu0 0
  %103 = vmatpush1.bf16.xpose.msra.mxu0 %v78
  %104 = vmatprep.subr.bf16.mxu0 0
  %105 = vmatpush1.bf16.xpose.msra.mxu0 %v77
  %106 = vmatprep.subr.bf16.mxu0 0
  %107 = vmatpush1.bf16.xpose.msra.mxu0 %v76
  %108 = vmatprep.subr.bf16.mxu0 0
  %109 = vmatpush2.bf16.xpose.msra.mxu0 0
  %110 = vmatprep.subr.bf16.mxu0 0
  %111 = vmatpush2.bf16.xpose.msra.mxu0 0
  %112 = vmatprep.subr.bf16.mxu0 0
  %113 = vmatpush2.bf16.xpose.msra.mxu0 0
  %114 = vmatprep.subr.bf16.mxu0 0
  %115 = vmatpush2.bf16.xpose.msra.mxu0 0
  %116 = vmatprep.subr.bf16.mxu0 0
  %117 = vmatpush2.bf16.xpose.msra.mxu0 0
  %118 = vmatprep.subr.bf16.mxu0 0
  %119 = vmatpush2.bf16.xpose.msra.mxu0 0
  %120 = vmatprep.subr.bf16.mxu0 0
  %121 = vmatpush2.bf16.xpose.msra.mxu0 0
  %122 = vmatprep.subr.bf16.mxu0 0
  %123 = vmatpush2.bf16.xpose.msra.mxu0 0
  %124 = vmatprep.mubr.bf16.mxu0 0
  %125 = vmatmul.mubr.bf16.gmra.mxu0 %v42
  %v126 = vpop.f32.mrf.mxu0
  %v127 = vadd.f32 0.0, %v126
  %v128 = vpop.f32.mrf.mxu0
  %v129 = vpop.f32.mrf.mxu0
  %v130 = vadd.f32 0.0, %v129
  %v131 = vpop.f32.mrf.mxu0
  %132 = vdwg.mxu0
  %v133 = vadd.f32 %v18, %v127
  %v134 = vadd.f32 %v19, %v130
  %135 = vst [vmem:[%s2] sm:$0xff] %v133
  %136 = vst [vmem:[%s2 + $0x8] sm:$0xff] %v134
  // Predicated region
  $region14: #{classifier_head.1} parent=0 // pred_check
    _
  $region15: #{classifier_head.1} parent=0 // pred_check_branch
    %138 = sbr.rel (0) target = $region17
  $region16: #{classifier_head.1} parent=0 // pred_region
    _
  $region17: #{classifier_head.1} parent=0 // pred_fallthru
    _
  // Predicated region
  $region18: #{classifier_head.1} parent=0 // pred_check
    _
  $region19: #{classifier_head.1} parent=0 // pred_check_branch
    %140 = sbr.rel (0) target = $region21
  $region20: #{classifier_head.1} parent=0 // pred_region
    _
  $region21: #{classifier_head.1} parent=0 // pred_fallthru
    _

</llo_original>
